<compile_context>
chip_gen: v7x
topology: tpu7x:2x2x1
jax: 0.10.0
libtpu: 0.0.40
codegen_flags: <defaults>
</compile_context>

<pallas_src>
import jax
import jax.numpy as jnp
from jax.experimental import pallas as pl
from jax.experimental.pallas import tpu as pltpu

LANES = 128
MAX_TILES_PER_BLOCK = 512      # 512 tiles * 4 KiB (native packing) ~= 2 MiB / input / step
MIN_GOOD_BLOCK_TILES = 64      # below this, prefer the (rare) pad fallback
MAX_CHUNK_TILES = 32           # in-kernel reduction chunk (bounds f32 temporaries)


def _natural_sublanes(dtype) -> int:
    """Sublane count of one packed native (sublane, 128) tile for `dtype`."""
    itemsize = jnp.dtype(dtype).itemsize
    return max(8, 32 // max(itemsize, 1))     # f32 -> 8, bf16 -> 16, int8/fp8 -> 32


def _largest_divisor_leq(n: int, cap: int) -> int:
    cap = max(1, min(cap, n))
    for d in range(cap, 0, -1):
        if n % d == 0:
            return d
    return 1


def _round_up(a: int, b: int) -> int:
    return ((a + b - 1) // b) * b


def _make_kernel(chunk_tiles: int, n_chunks: int):
    unroll = n_chunks <= 32

    def kernel(x_ref, y_ref, o_ref):
        # One grid step reduces its (tiles_per_block, S, 128) input block to a
        # single (1, S, 128) f32 partial sum.  Chunking keeps the f32
        # temporaries (casts / tanh / diff / square) to <= chunk_tiles tiles.
        def chunk_body(j, acc):
            start = pl.multiple_of(j * chunk_tiles, chunk_tiles)
            xs = x_ref[pl.ds(start, chunk_tiles), :, :].astype(jnp.float32)
            ys = y_ref[pl.ds(start, chunk_tiles), :, :].astype(jnp.float32)
            d = jnp.tanh(xs) - jnp.tanh(ys)            # tanh goes to the EUP slot
            # Reduce only the leading (tile) axis: pure VPU adds of whole
            # (S, 128) vreg tiles; no per-step cross-lane (XLU) reduction.
            return acc + jnp.sum(d * d, axis=0, keepdims=True)

        acc0 = jnp.zeros(o_ref.shape, jnp.float32)
        o_ref[...] = jax.lax.fori_loop(0, n_chunks, chunk_body, acc0,
                                       unroll=unroll)

    return kernel


def tanh_l2_loss(x, y):
    if x.shape != y.shape:
        raise ValueError(
            f"Shapes of x and y do not match. x shape: {x.shape}, y shape: {y.shape}")
    n_elems = int(x.size)
    if n_elems == 0:
        return jnp.float32(jnp.nan)    # torch.mean over an empty tensor is nan

    sublanes = max(_natural_sublanes(x.dtype), _natural_sublanes(y.dtype))
    tile_elems = sublanes * LANES

    # ---- choose tiling (all static / trace-time Python) ---------------------
    aligned = (n_elems % tile_elems == 0)
    needs_pad = not aligned
    tiles_per_block = 1
    n_tiles = 0
    if aligned:
        n_tiles = n_elems // tile_elems
        tiles_per_block = _largest_divisor_leq(n_tiles, MAX_TILES_PER_BLOCK)
        # If exact-coverage blocks would be tiny (pathological tile counts),
        # fall back to a padded block-aligned layout instead.
        needs_pad = tiles_per_block < min(MIN_GOOD_BLOCK_TILES, n_tiles)
    if needs_pad:
        n_tiles_raw = -(-n_elems // tile_elems)
        tiles_per_block = min(MAX_TILES_PER_BLOCK,
                              max(1, pl.next_power_of_2(max(n_tiles_raw, 1))))
        n_tiles = _round_up(n_tiles_raw, tiles_per_block)

    n_blocks = n_tiles // tiles_per_block
    chunk_tiles = _largest_divisor_leq(tiles_per_block, MAX_CHUNK_TILES)
    n_chunks = tiles_per_block // chunk_tiles

    # ---- lay the inputs out as (tiles, SUBLANES, 128) slabs ------------------
    xf = jnp.ravel(x)
    yf = jnp.ravel(y)
    padded_elems = n_tiles * tile_elems
    if padded_elems != n_elems:
        # Rare fallback (non-tile-aligned or pathological sizes).  Zero pad is
        # numerically neutral: tanh(0)-tanh(0)==0 and the mean divides by the
        # TRUE element count below.
        xf = jnp.pad(xf, (0, padded_elems - n_elems))
        yf = jnp.pad(yf, (0, padded_elems - n_elems))
    xf = xf.reshape(n_tiles, sublanes, LANES)
    yf = yf.reshape(n_tiles, sublanes, LANES)

    # ---- pallas_call ---------------------------------------------------------
    in_spec = pl.BlockSpec((tiles_per_block, sublanes, LANES),
                           lambda i: (i, 0, 0))
    out_spec = pl.BlockSpec((1, sublanes, LANES), lambda i: (i, 0, 0))

    block_in_bytes = tiles_per_block * tile_elems * (
        jnp.dtype(x.dtype).itemsize + jnp.dtype(y.dtype).itemsize)
    out_bytes = n_blocks * sublanes * LANES * 4
    # Double-buffered input blocks + output block + in-kernel f32 chunk
    # temporaries, with 2x slack; clamped so it is legal on every generation
    # (v5e 128 MiB physical / 16 MiB scoped default, v7x 64 MiB physical).
    vmem_needed = (2 * block_in_bytes
                   + 2 * sublanes * LANES * 4
                   + 6 * chunk_tiles * sublanes * LANES * 4)
    vmem_limit = max(24 << 20, min(2 * vmem_needed + (8 << 20), 48 << 20))

    partials = pl.pallas_call(
        _make_kernel(chunk_tiles, n_chunks),
        out_shape=jax.ShapeDtypeStruct((n_blocks, sublanes, LANES), jnp.float32),
        grid_spec=pltpu.PrefetchScalarGridSpec(
            num_scalar_prefetch=0,
            grid=(n_blocks,),
            in_specs=[in_spec, in_spec],
            out_specs=out_spec,
        ),
        compiler_params=pltpu.CompilerParams(
            # Per-block partials are independent, so the single grid axis can
            # be sharded across TensorCores on megacore parts.
            dimension_semantics=("parallel",),
            vmem_limit_bytes=int(vmem_limit),
        ),
        cost_estimate=pl.CostEstimate(
            flops=5 * n_elems,
            transcendentals=2 * n_elems,
            bytes_accessed=int(x.nbytes) + int(y.nbytes) + int(out_bytes),
        ),
    )(xf, yf)

    # Final tree-reduce of the tiny per-block partial slab and mean over the
    # TRUE element count.
    return jnp.sum(partials) / jnp.float32(n_elems)


if __name__ == "__main__":
    key = jax.random.PRNGKey(0)
    kx, ky = jax.random.split(key)

    # Main check: NCHW-style float32 inputs, tile-aligned (pad-free fast path).
    x = jax.random.normal(kx, (2, 4, 16, 16), dtype=jnp.float32)
    y = jax.random.normal(ky, (2, 4, 16, 16), dtype=jnp.float32)
    loss = jax.block_until_ready(tanh_l2_loss(x, y))
    ref = jnp.mean((jnp.tanh(x) - jnp.tanh(y)) ** 2)
    assert jnp.allclose(loss, ref, rtol=1e-5, atol=1e-6), (loss, ref)

    # Non-tile-aligned shape exercises the minimal zero-pad fallback path.
    x2 = jax.random.normal(kx, (3, 5, 7), dtype=jnp.float32)
    y2 = jax.random.normal(ky, (3, 5, 7), dtype=jnp.float32)
    loss2 = jax.block_until_ready(tanh_l2_loss(x2, y2))
    ref2 = jnp.mean((jnp.tanh(x2) - jnp.tanh(y2)) ** 2)
    assert jnp.allclose(loss2, ref2, rtol=1e-5, atol=1e-6), (loss2, ref2)

    # bf16 inputs exercise the dtype-aware (16, 128) packing path.
    xb = jax.random.normal(kx, (2, 4, 16, 16), dtype=jnp.bfloat16)
    yb = jax.random.normal(ky, (2, 4, 16, 16), dtype=jnp.bfloat16)
    loss3 = jax.block_until_ready(tanh_l2_loss(xb, yb))
    ref3 = jnp.mean((jnp.tanh(xb.astype(jnp.float32))
                     - jnp.tanh(yb.astype(jnp.float32))) ** 2)
    assert jnp.allclose(loss3, ref3, rtol=1e-3, atol=1e-3), (loss3, ref3)

    print("KERNEL_OK")
</pallas_src>

<mosaic_0001>
module attributes {stable_mosaic.version = 11 : i64} {
  func.func @kernel(%arg0: i32, %arg1: memref<2x8x128xf32, #tpu.memory_space<vmem>>, %arg2: memref<2x8x128xf32, #tpu.memory_space<vmem>>, %arg3: memref<1x8x128xf32, #tpu.memory_space<vmem>>) attributes {dimension_semantics = [#tpu.dimension_semantics<parallel>], iteration_bounds = array<i64: 1>, scalar_prefetch = 0 : i64, scratch_operands = 0 : i64, tpu.core_type = #tpu.core_type<tc>, window_params = [{transform_indices = @transform_0, window_bounds = array<i64: 2, 8, 128>}, {transform_indices = @transform_1, window_bounds = array<i64: 2, 8, 128>}, {transform_indices = @transform_2, window_bounds = array<i64: 1, 8, 128>}]} {
    %cst = arith.constant 0.000000e+00 : f32
    %0 = vector.broadcast %cst : f32 to vector<1x8x128xf32>
    %c0_i32 = arith.constant 0 : i32
    %c2_i32 = arith.constant 2 : i32
    %1 = arith.muli %c0_i32, %c2_i32 : i32
    %2 = tpu.assume_multiple %1, 2 : i32
    %3 = arith.index_cast %2 : i32 to index
    %c0 = arith.constant 0 : index
    %c0_0 = arith.constant 0 : index
    %4 = vector.load %arg1[%3, %c0, %c0_0] : memref<2x8x128xf32, #tpu.memory_space<vmem>>, vector<2x8x128xf32>
    %5 = arith.index_cast %2 : i32 to index
    %c0_1 = arith.constant 0 : index
    %c0_2 = arith.constant 0 : index
    %6 = vector.load %arg2[%5, %c0_1, %c0_2] : memref<2x8x128xf32, #tpu.memory_space<vmem>>, vector<2x8x128xf32>
    %7 = math.tanh %4 : vector<2x8x128xf32>
    %8 = math.tanh %6 : vector<2x8x128xf32>
    %9 = arith.subf %7, %8 : vector<2x8x128xf32>
    %10 = arith.mulf %9, %9 : vector<2x8x128xf32>
    %cst_3 = arith.constant dense<0.000000e+00> : vector<8x128xf32>
    %11 = vector.multi_reduction <add>, %10, %cst_3 [0] : vector<2x8x128xf32> to vector<8x128xf32>
    %12 = vector.shape_cast %11 : vector<8x128xf32> to vector<1x8x128xf32>
    %13 = arith.addf %0, %12 : vector<1x8x128xf32>
    %c1_i32 = arith.constant 1 : i32
    %c0_4 = arith.constant 0 : index
    %c0_5 = arith.constant 0 : index
    %c0_6 = arith.constant 0 : index
    %14 = vector.load %arg3[%c0_4, %c0_5, %c0_6] : memref<1x8x128xf32, #tpu.memory_space<vmem>>, vector<1x8x128xf32>
    tpu.vector_store %arg3[%c0_4, %c0_5, %c0_6], %13 {strides = array<i32>} : memref<1x8x128xf32, #tpu.memory_space<vmem>>, vector<1x8x128xf32>,
    return
  }
  func.func @transform_0(%arg0: i32) -> (i32, i32, i32) {
    %c0_i32 = arith.constant 0 : i32
    %c0_i32_0 = arith.constant 0 : i32
    %c0_i32_1 = arith.constant 0 : i32
    return %arg0, %c0_i32, %c0_i32_0 : i32, i32, i32
  }
  func.func @transform_1(%arg0: i32) -> (i32, i32, i32) {
    %c0_i32 = arith.constant 0 : i32
    %c0_i32_0 = arith.constant 0 : i32
    %c0_i32_1 = arith.constant 0 : i32
    return %arg0, %c0_i32, %c0_i32_0 : i32, i32, i32
  }
  func.func @transform_2(%arg0: i32) -> (i32, i32, i32) {
    %c0_i32 = arith.constant 0 : i32
    %c0_i32_0 = arith.constant 0 : i32
    %c0_i32_1 = arith.constant 0 : i32
    return %arg0, %c0_i32, %c0_i32_0 : i32, i32, i32
  }
}

</mosaic_0001>

<llo_original>
// kernel: tpu_custom_call.1
$region0: #{tpu_custom_call.1}
  #allocation0 [shape = 'u32[]', space=smem, size = 0x4, offset = 0x4, fixed_abs, tag = 'smem constant byte address 0x4 - core index']
  #allocation1 [shape = 'u32[144,128]{1,0:T(1,128)}', space=vmem, size = 0x12000, scoped, tag = 'internal scratch']
  %s0 = inlined_call_operand.hbm [shape: f32[2,8,128], index: 0, kind: input, shape index: {}]
  %s1 = inlined_call_operand.hbm [shape: f32[2,8,128], index: 1, kind: input, shape index: {}]
  %s2 = inlined_call_operand.hbm [shape: f32[1,8,128], index: 2, kind: output, shape index: {}]
  %s3 = sld [smem:[#allocation0]]
  $region26: #{tpu_custom_call.1} parent=0
    _
  %s5 = ssub.s32 1, %s3
  %s6 = scalar_select 0, %s5, %s3
  $region1: #{tpu_custom_call.1} parent=0
    #allocation2 [shape = 'u8[8192]{0}', space=vmem, size = 0x2000, scoped, tag = 'input window, operand 0, single buffered']
    #allocation3 [shape = 's32[1]{0}', space=sflag, size = 0x4, scoped, tag = 'scoped memory for tpu_custom_call.1']
    #allocation4 [shape = 's32[1]{0}', space=sflag, size = 0x4, scoped, tag = 'scoped memory for tpu_custom_call.1']
    #allocation5 [shape = 'u8[8192]{0}', space=vmem, size = 0x2000, scoped, tag = 'input window, operand 1, single buffered']
    #allocation6 [shape = 's32[1]{0}', space=sflag, size = 0x4, scoped, tag = 'scoped memory for tpu_custom_call.1']
    #allocation7 [shape = 'u8[4096]{0}', space=vmem, size = 0x1000, scoped, tag = 'output window, operand 0, single buffered']
    %7 = vsyncpa [#allocation3], 0
    %8 = vsyncpa [#allocation6], 0
    %9 = vsyncpa [#allocation4], 0
    // Predicated region
    $region2: #{tpu_custom_call.1} parent=1 // pred_check
      _
    $region3: #{tpu_custom_call.1} parent=1 // pred_check_branch
      %11 = sbr.rel (0) target = $region5
    $region4: #{tpu_custom_call.1} parent=1 // pred_region
      %s13 = ssub.s32 256, 256
      %14 = vsyncadd [#allocation3], %s13
      %s15 = sshll.u32 [#allocation2], 4
      %s16 = int_to_ptr.vmem [resolvable:$true] %s15
      %21 = dma.hbm_to_vmem [thread:$0]  %s0, 256, %s16, [#allocation3], 128, 128, 8
    $region5: #{tpu_custom_call.1} parent=1 // pred_fallthru
      _
    // Predicated region
    $region6: #{tpu_custom_call.1} parent=1 // pred_check
      _
    $region7: #{tpu_custom_call.1} parent=1 // pred_check_branch
      %23 = sbr.rel (0) target = $region9
    $region8: #{tpu_custom_call.1} parent=1 // pred_region
      %s25 = ssub.s32 256, 256
      %26 = vsyncadd [#allocation6], %s25
      %s27 = sshll.u32 [#allocation5], 4
      %s28 = int_to_ptr.vmem [resolvable:$true] %s27
      %33 = dma.hbm_to_vmem [thread:$0]  %s1, 256, %s28, [#allocation6], 128, 128, 8
    $region9: #{tpu_custom_call.1} parent=1 // pred_fallthru
      _
    // Predicated region
    $region10: #{tpu_custom_call.1} parent=1 // pred_check
      _
    $region11: #{tpu_custom_call.1} parent=1 // pred_check_branch
      %35 = sbr.rel (0) target = $region13
    $region12: #{tpu_custom_call.1} parent=1 // pred_region
      %36 = dma.done [#allocation3], 256
    $region13: #{tpu_custom_call.1} parent=1 // pred_fallthru
      _
    // Predicated region
    $region14: #{tpu_custom_call.1} parent=1 // pred_check
      _
    $region15: #{tpu_custom_call.1} parent=1 // pred_check_branch
      %38 = sbr.rel (0) target = $region17
    $region16: #{tpu_custom_call.1} parent=1 // pred_region
      %39 = dma.done [#allocation6], 256
    $region17: #{tpu_custom_call.1} parent=1 // pred_fallthru
      _
    %s40 = smul.u32 0, 8
    %s41 = scalar_lea.vmem [#allocation2], %s40
    %v42 = vld [vmem:[%s41] sm:$0xff]
    %v43 = vld [vmem:[%s41 + $0x8] sm:$0xff]
    %s44 = scalar_lea.vmem [#allocation5], %s40
    %v45 = vld [vmem:[%s44] sm:$0xff]
    %v46 = vld [vmem:[%s44 + $0x8] sm:$0xff]
    %v47 = vtanh.pop %v42
    %v48 = vtanh.pop %v43
    %v49 = vtanh.pop %v45
    %v50 = vtanh.pop %v46
    %v51 = vsub.f32 %v47, %v49
    %v52 = vsub.f32 %v48, %v50
    %v53 = vmul.f32 %v51, %v51
    %v54 = vmul.f32 %v52, %v52
    %v55 = vadd.f32 %v53, %v54
    %v56 = vadd.f32 %v55, 0.0
    %57 = vst [vmem:[#allocation7] sm:$0xff] %v56
    // Predicated region
    $region18: #{tpu_custom_call.1} parent=1 // pred_check
      _
    $region19: #{tpu_custom_call.1} parent=1 // pred_check_branch
      %59 = sbr.rel (0) target = $region21
    $region20: #{tpu_custom_call.1} parent=1 // pred_region
      %s61 = ssub.s32 128, 128
      %62 = vsyncadd [#allocation4], %s61
      %s64 = sshll.u32 [#allocation7], 4
      %s65 = int_to_ptr.vmem [resolvable:$true] %s64
      %67 = dma.vmem_to_hbm [thread:$0]  %s65, 128, %s2, [#allocation4]
    $region21: #{tpu_custom_call.1} parent=1 // pred_fallthru
      _
    // Predicated region
    $region22: #{tpu_custom_call.1} parent=1 // pred_check
      _
    $region23: #{tpu_custom_call.1} parent=1 // pred_check_branch
      %69 = sbr.rel (0) target = $region25
    $region24: #{tpu_custom_call.1} parent=1 // pred_region
      %70 = dma.done [#allocation4], 128
    $region25: #{tpu_custom_call.1} parent=1 // pred_fallthru
      _
    %71 = vsyncpa [#allocation3], 1
    %72 = vsyncpa [#allocation6], 1
    %73 = vsyncpa [#allocation4], 1

</llo_original>
